<compile_context>
chip_gen: v7x
topology: tpu7x:2x2x1
jax: 0.10.0
libtpu: 0.0.40
codegen_flags: <defaults>
</compile_context>

<pallas_src>
import jax
import jax.numpy as jnp
from jax.experimental import pallas as pl
from jax.experimental.pallas import tpu as pltpu


def sigmoid_kernel(x_ref, o_ref):
    # One (TR, TC) tile: out = 1 / (1 + exp(-x)), computed in f32.
    x = x_ref[...].astype(jnp.float32)  # no-op for f32 inputs; upcast for bf16
    o_ref[...] = (1.0 / (1.0 + jnp.exp(-x))).astype(o_ref.dtype)


def _pick_tile(dim: int, unit: int, cap: int) -> int:
    """Largest multiple of `unit` that divides `dim` and is <= cap; else the full dim.

    Full-extent blocks are always legal under the (8, 128) BlockSpec rule, so we
    never emit a partial (masked-store) last tile.
    """
    if dim % unit != 0:
        return dim
    t = min(dim, cap - (cap % unit))
    while t >= unit:
        if dim % t == 0:
            return t
        t -= unit
    return dim


def sigmoid_forward(x: jax.Array, *, max_rows: int = 512, max_cols: int = 2048) -> jax.Array:
    """sigmoid.forward: elementwise 1 / (1 + exp(-x)) via a tiled Pallas kernel."""
    if x.ndim != 2:
        # The mini-framework feeds 2D (batch, features) tensors; flatten anything else.
        orig_shape = x.shape
        x2 = x.reshape(orig_shape[0], -1)
        return sigmoid_forward(x2, max_rows=max_rows, max_cols=max_cols).reshape(orig_shape)

    n, d = x.shape
    tr = _pick_tile(n, 8, max_rows)      # sublane-aligned row tile (or full batch)
    tc = _pick_tile(d, 128, max_cols)    # lane-dense feature tile (or full width)
    grid = (n // tr, d // tc)

    # Double-buffered input + output at the 512x2048 f32 cap is ~16 MiB total,
    # comfortably inside every generation's VMEM; 48 MiB limit leaves headroom.
    return pl.pallas_call(
        sigmoid_kernel,
        out_shape=jax.ShapeDtypeStruct((n, d), x.dtype),
        grid_spec=pltpu.PrefetchScalarGridSpec(
            num_scalar_prefetch=0,
            grid=grid,
            in_specs=[pl.BlockSpec((tr, tc), lambda i, j: (i, j))],
            out_specs=pl.BlockSpec((tr, tc), lambda i, j: (i, j)),
        ),
        compiler_params=pltpu.CompilerParams(
            dimension_semantics=("parallel", "parallel"),
            vmem_limit_bytes=48 * 1024 * 1024,
        ),
    )(x)


def sigmoid_reference(x: jax.Array) -> jax.Array:
    # Plain-JAX reference mirroring the PyTorch module exactly.
    return 1.0 / (1.0 + jnp.exp(-x))


if __name__ == "__main__":
    key = jax.random.PRNGKey(0)
    # Small 2D (batch, features) shape typical of this mini-framework.
    x = jax.random.normal(key, (8, 256), dtype=jnp.float32) * 2.0 + 0.5

    out = jax.block_until_ready(sigmoid_forward(x))

    ref = sigmoid_reference(x)
    assert out.shape == x.shape and out.dtype == x.dtype
    assert jnp.allclose(out, ref, atol=1e-6, rtol=1e-6), "Pallas sigmoid mismatch vs reference"

    print("KERNEL_OK")
</pallas_src>

<mosaic_0001>
module attributes {stable_mosaic.version = 11 : i64} {
  func.func @sigmoid_kernel(%arg0: i32, %arg1: i32, %arg2: memref<8x256xf32, #tpu.memory_space<vmem>>, %arg3: memref<8x256xf32, #tpu.memory_space<vmem>>) attributes {dimension_semantics = [#tpu.dimension_semantics<parallel>, #tpu.dimension_semantics<parallel>], iteration_bounds = array<i64: 1, 1>, scalar_prefetch = 0 : i64, scratch_operands = 0 : i64, tpu.core_type = #tpu.core_type<tc>, window_params = [{transform_indices = @transform_0, window_bounds = array<i64: 8, 256>}, {transform_indices = @transform_1, window_bounds = array<i64: 8, 256>}]} {
    %c0 = arith.constant 0 : index
    %c0_0 = arith.constant 0 : index
    %0 = vector.load %arg2[%c0, %c0_0] : memref<8x256xf32, #tpu.memory_space<vmem>>, vector<8x256xf32>
    %cst = arith.constant 0.000000e+00 : f32
    %1 = vector.broadcast %cst : f32 to vector<8x256xf32>
    %2 = arith.subf %1, %0 : vector<8x256xf32>
    %3 = math.exp %2 : vector<8x256xf32>
    %cst_1 = arith.constant 1.000000e+00 : f32
    %4 = vector.broadcast %cst_1 : f32 to vector<8x256xf32>
    %5 = arith.addf %4, %3 : vector<8x256xf32>
    %cst_2 = arith.constant 1.000000e+00 : f32
    %6 = vector.broadcast %cst_2 : f32 to vector<8x256xf32>
    %7 = arith.divf %6, %5 : vector<8x256xf32>
    %c0_3 = arith.constant 0 : index
    %c0_4 = arith.constant 0 : index
    %8 = vector.load %arg3[%c0_3, %c0_4] : memref<8x256xf32, #tpu.memory_space<vmem>>, vector<8x256xf32>
    tpu.vector_store %arg3[%c0_3, %c0_4], %7 {strides = array<i32>} : memref<8x256xf32, #tpu.memory_space<vmem>>, vector<8x256xf32>,
    return
  }
  func.func @transform_0(%arg0: i32, %arg1: i32) -> (i32, i32) {
    %c0_i32 = arith.constant 0 : i32
    return %arg0, %arg1 : i32, i32
  }
  func.func @transform_1(%arg0: i32, %arg1: i32) -> (i32, i32) {
    %c0_i32 = arith.constant 0 : i32
    return %arg0, %arg1 : i32, i32
  }
}

</mosaic_0001>

<llo_original>
// kernel: tpu_custom_call.1
$region0: #{tpu_custom_call.1}
  #allocation0 [shape = 'u32[]', space=smem, size = 0x4, offset = 0x4, fixed_abs, tag = 'smem constant byte address 0x4 - core index']
  #allocation1 [shape = 'u32[144,128]{1,0:T(1,128)}', space=vmem, size = 0x12000, scoped, tag = 'internal scratch']
  %s0 = inlined_call_operand.hbm [shape: f32[8,256], index: 0, kind: input, shape index: {}]
  %s1 = inlined_call_operand.hbm [shape: f32[8,256], index: 1, kind: output, shape index: {}]
  %s2 = sld [smem:[#allocation0]]
  $region18: #{tpu_custom_call.1} parent=0
    _
  %s4 = ssub.s32 1, %s2
  %s5 = scalar_select 0, %s4, %s2
  $region1: #{tpu_custom_call.1} parent=0
    #allocation2 [shape = 'u8[8192]{0}', space=vmem, size = 0x2000, scoped, tag = 'input window, operand 0, single buffered']
    #allocation3 [shape = 's32[1]{0}', space=sflag, size = 0x4, scoped, tag = 'scoped memory for tpu_custom_call.1']
    #allocation4 [shape = 's32[1]{0}', space=sflag, size = 0x4, scoped, tag = 'scoped memory for tpu_custom_call.1']
    #allocation5 [shape = 'u8[8192]{0}', space=vmem, size = 0x2000, scoped, tag = 'output window, operand 0, single buffered']
    %6 = vsyncpa [#allocation3], 0
    %7 = vsyncpa [#allocation4], 0
    // Predicated region
    $region2: #{tpu_custom_call.1} parent=1 // pred_check
      _
    $region3: #{tpu_custom_call.1} parent=1 // pred_check_branch
      %9 = sbr.rel (0) target = $region5
    $region4: #{tpu_custom_call.1} parent=1 // pred_region
      %s11 = ssub.s32 256, 256
      %12 = vsyncadd [#allocation3], %s11
      %s14 = sshll.u32 [#allocation2], 4
      %s15 = int_to_ptr.vmem [resolvable:$true] %s14
      %17 = dma.hbm_to_vmem [thread:$0]  %s0, 256, %s15, [#allocation3]
    $region5: #{tpu_custom_call.1} parent=1 // pred_fallthru
      _
    // Predicated region
    $region6: #{tpu_custom_call.1} parent=1 // pred_check
      _
    $region7: #{tpu_custom_call.1} parent=1 // pred_check_branch
      %19 = sbr.rel (0) target = $region9
    $region8: #{tpu_custom_call.1} parent=1 // pred_region
      %20 = dma.done [#allocation3], 256
    $region9: #{tpu_custom_call.1} parent=1 // pred_fallthru
      _
    %v21 = vld [vmem:[#allocation2] sm:$0xff]
    %v22 = vld [vmem:[#allocation2 + $0x8] sm:$0xff]
    %v23 = vsub.f32 0.0, %v21
    %v24 = vsub.f32 0.0, %v22
    %v25 = vmul.f32 %v23, 1.442695
    %v26 = vpow.pop %v25
    %v27 = vmul.f32 %v24, 1.442695
    %v28 = vpow.pop %v27
    %v29 = vadd.f32 %v26, 1.0
    %v30 = vadd.f32 %v28, 1.0
    %v31 = vrcp.pop %v29
    %v32 = vmul.f32 1.0, %v31
    %v33 = vrcp.pop %v30
    %v34 = vmul.f32 1.0, %v33
    %35 = vst [vmem:[#allocation5] sm:$0xff] %v32
    %36 = vst [vmem:[#allocation5 + $0x8] sm:$0xff] %v34
    // Predicated region
    $region10: #{tpu_custom_call.1} parent=1 // pred_check
      _
    $region11: #{tpu_custom_call.1} parent=1 // pred_check_branch
      %38 = sbr.rel (0) target = $region13
    $region12: #{tpu_custom_call.1} parent=1 // pred_region
      %s40 = ssub.s32 256, 256
      %41 = vsyncadd [#allocation4], %s40
      %s43 = sshll.u32 [#allocation5], 4
      %s44 = int_to_ptr.vmem [resolvable:$true] %s43
      %46 = dma.vmem_to_hbm [thread:$0]  %s44, 256, %s1, [#allocation4]
    $region13: #{tpu_custom_call.1} parent=1 // pred_fallthru
      _
    // Predicated region
    $region14: #{tpu_custom_call.1} parent=1 // pred_check
      _
    $region15: #{tpu_custom_call.1} parent=1 // pred_check_branch
      %48 = sbr.rel (0) target = $region17
    $region16: #{tpu_custom_call.1} parent=1 // pred_region
      %49 = dma.done [#allocation4], 256
    $region17: #{tpu_custom_call.1} parent=1 // pred_fallthru
      _
    %50 = vsyncpa [#allocation3], 1
    %51 = vsyncpa [#allocation4], 1

</llo_original>
